<compile_context>
chip_gen: v7x
topology: tpu7x:2x2x1
jax: 0.10.0
libtpu: 0.0.40
codegen_flags: <defaults>
</compile_context>

<pallas_src>
import functools

import jax
import jax.numpy as jnp
from jax.experimental import pallas as pl
from jax.experimental.pallas import tpu as pltpu


def _round_up(x, m):
    return (x + m - 1) // m * m


def _layernorm_rows_f32(y, eps):
    """LayerNorm over the last axis (gamma=1, beta=0) in f32.

    Single reduction pass: sum and sum-of-squares computed together, mean/var
    derived from them (avoids a second centering sweep over [TM, d_model]).
    """
    n = y.shape[-1]
    inv_n = 1.0 / n
    s = jnp.sum(y, axis=-1, keepdims=True)
    ss = jnp.sum(y * y, axis=-1, keepdims=True)
    mean = s * inv_n
    var = jnp.maximum(ss * inv_n - mean * mean, 0.0)
    return (y - mean) * jax.lax.rsqrt(var + eps)


def _ffn_ln_single_kernel(x_ref, w1_ref, w2_ref, o_ref, *, eps):
    # Fully-resident weights: grid = (row_tiles,), no accumulator scratch.
    x = x_ref[...]
    h = jnp.dot(x, w1_ref[...], preferred_element_type=jnp.float32)
    h = jnp.maximum(h, 0.0)
    y = jnp.dot(h.astype(w2_ref.dtype), w2_ref[...],
                preferred_element_type=jnp.float32)
    y = y + x.astype(jnp.float32)
    o_ref[...] = _layernorm_rows_f32(y, eps).astype(o_ref.dtype)


def _ffn_ln_multi_kernel(x_ref, w1_ref, w2_ref, o_ref, acc_ref, *, eps):
    # Streamed d_ff blocks: grid = (row_tiles, d_ff_tiles); acc_ref is f32.
    k = pl.program_id(1)
    x = x_ref[...]
    h = jnp.dot(x, w1_ref[...], preferred_element_type=jnp.float32)
    h = jnp.maximum(h, 0.0)
    prod = jnp.dot(h.astype(w2_ref.dtype), w2_ref[...],
                   preferred_element_type=jnp.float32)

    @pl.when(k == 0)
    def _():
        acc_ref[...] = prod            # first block: plain store, no zero-fill

    @pl.when(k > 0)
    def _():
        acc_ref[...] += prod

    @pl.when(k == pl.num_programs(1) - 1)
    def _():
        y = acc_ref[...] + x.astype(jnp.float32)
        o_ref[...] = _layernorm_rows_f32(y, eps).astype(o_ref.dtype)


def _vmem_budget_bytes():
    """Per-kernel VMEM budget, gated on the TPU generation."""
    try:
        cap = int(pltpu.get_tpu_info().vmem_capacity_bytes)
    except Exception:
        cap = 0
    if cap >= (96 << 20):      # v5e / v6e: 128 MiB physical VMEM per core
        return 100 << 20
    return 48 << 20            # v7x (64 MiB per TensorCore) or unknown: stay safe


def _per_step_vmem_bytes(tm, tf, d_model, xb, wb, single_k):
    # x/output tiles are double-buffered by the pipeline.  Weights are
    # budgeted at 2 buffers (conservative: valid whether or not the
    # Buffered(1) request on resident weights takes effect).
    est = (2 * tm * d_model * xb          # x tile
           + 2 * tm * d_model * xb        # output tile
           + 2 * d_model * tf * wb        # W1 block(s)
           + 2 * tf * d_model * wb        # W2 block(s)
           + tm * tf * 4)                 # f32 intermediate h
    if not single_k:
        est += tm * d_model * 4           # f32 accumulator scratch
    return est


def poswise_ffn(x, w1, w2, *, eps=1e-5, compute_dtype=None):
    """y = LayerNorm(relu(x @ w1) @ w2 + x), gamma=1 / beta=0.

    x:  [B, S, d_model]
    w1: [d_model, d_ff]   (nn.Linear(d_model, d_ff).weight transposed)
    w2: [d_ff, d_model]   (nn.Linear(d_ff, d_model).weight transposed)
    compute_dtype: optionally cast operands (e.g. jnp.bfloat16) for full-rate
    MXU + halved weight DMA; accumulation and the LN epilogue stay f32.
    """
    B, S, d_model = x.shape
    d_ff = w1.shape[1]
    assert w1.shape == (d_model, d_ff) and w2.shape == (d_ff, d_model)

    out_dtype = x.dtype
    if compute_dtype is not None:
        x = x.astype(compute_dtype)
        w1 = w1.astype(compute_dtype)
        w2 = w2.astype(compute_dtype)

    xb = x.dtype.itemsize
    wb = w1.dtype.itemsize

    tokens = B * S
    tm_cap = _round_up(tokens, 16)       # multiple of 16: f32 & bf16 layouts ok
    budget = _vmem_budget_bytes()

    # ---- tile selection --------------------------------------------------
    # Prefer fully-resident weights (W1/W2 pulled from HBM exactly once for
    # the whole grid) with the largest row tile that fits the budget; only
    # stream d_ff blocks when the weights themselves don't fit.
    tm = tf = None
    d_ff_pad = d_ff
    for cand_tm in (512, 256, 128, 64, 32, 16):
        t = min(cand_tm, tm_cap)
        if _per_step_vmem_bytes(t, d_ff, d_model, xb, wb, True) <= budget:
            tm, tf = t, d_ff
            break
    if tf is None:
        # Stream d_ff; pad it so a >=256 tile always divides (keeps the
        # 256x256 MXUs on v6e/v7x full; zero-padded W1 cols / W2 rows are exact).
        d_ff_pad = _round_up(d_ff, 256)
        for cand_tf in (2048, 1024, 512, 256):
            if d_ff_pad % cand_tf != 0:
                continue
            for cand_tm in (512, 256, 128, 64, 32, 16):
                t = min(cand_tm, tm_cap)
                if _per_step_vmem_bytes(t, cand_tf, d_model, xb, wb, False) <= budget:
                    tm, tf = t, cand_tf
                    break
            if tf is not None:
                break
    assert tf is not None, "no (tile_m, tile_ff) configuration fits the VMEM budget"

    single_k = (tf == d_ff_pad)
    padded_tokens = _round_up(tokens, tm)

    if single_k:
        # v7x has 2 TensorCores; the row axis (marked "parallel") is what gets
        # sharded across them, so give it >= 2 steps when there is enough work.
        # Weights are resident, so smaller row tiles add no weight HBM traffic.
        while padded_tokens // tm < 2 and tm > 16:
            tm = max(16, _round_up(tm // 2, 16))
            padded_tokens = _round_up(tokens, tm)

    x2 = x.reshape(tokens, d_model)
    if padded_tokens != tokens:
        x2 = jnp.pad(x2, ((0, padded_tokens - tokens), (0, 0)))
    if d_ff_pad != d_ff:
        w1 = jnp.pad(w1, ((0, 0), (0, d_ff_pad - d_ff)))
        w2 = jnp.pad(w2, ((0, d_ff_pad - d_ff), (0, 0)))

    num_row_tiles = padded_tokens // tm
    per_step = _per_step_vmem_bytes(tm, tf, d_model, xb, wb, single_k)
    vmem_limit = int(min(max(2 * per_step, 32 << 20), budget))

    # Honest HBM-traffic hint: weights are re-streamed once per row tile only
    # when d_ff is tiled; output bytes included.
    out_b = jnp.dtype(out_dtype).itemsize
    weight_bytes = 2 * d_model * d_ff_pad * wb
    weight_passes = 1 if single_k else num_row_tiles
    cost = pl.CostEstimate(
        flops=4 * tokens * d_model * d_ff,       # two GEMMs
        transcendentals=tokens,                  # one rsqrt per row
        bytes_accessed=int(tokens * d_model * (xb + out_b)
                           + weight_passes * weight_bytes),
    )

    def _run(single_buffer_weights):
        if single_k:
            if single_buffer_weights:
                # Constant block index -> single buffer is enough; halves the
                # resident weight VMEM footprint.
                w_kwargs = dict(pipeline_mode=pl.Buffered(1))
            else:
                w_kwargs = {}
            grid_spec = pltpu.PrefetchScalarGridSpec(
                num_scalar_prefetch=0,
                grid=(num_row_tiles,),
                in_specs=[
                    pl.BlockSpec((tm, d_model), lambda i: (i, 0)),        # x tile
                    pl.BlockSpec((d_model, tf), lambda i: (0, 0), **w_kwargs),  # W1
                    pl.BlockSpec((tf, d_model), lambda i: (0, 0), **w_kwargs),  # W2
                ],
                out_specs=pl.BlockSpec((tm, d_model), lambda i: (i, 0)),
            )
            kernel = functools.partial(_ffn_ln_single_kernel, eps=eps)
            dims = ("parallel",)
        else:
            grid_spec = pltpu.PrefetchScalarGridSpec(
                num_scalar_prefetch=0,
                grid=(num_row_tiles, d_ff_pad // tf),
                in_specs=[
                    pl.BlockSpec((tm, d_model), lambda i, k: (i, 0)),   # x tile
                    pl.BlockSpec((d_model, tf), lambda i, k: (0, k)),   # W1 block
                    pl.BlockSpec((tf, d_model), lambda i, k: (k, 0)),   # W2 block
                ],
                out_specs=pl.BlockSpec((tm, d_model), lambda i, k: (i, 0)),
                scratch_shapes=[pltpu.VMEM((tm, d_model), jnp.float32)],
            )
            kernel = functools.partial(_ffn_ln_multi_kernel, eps=eps)
            dims = ("parallel", "arbitrary")

        return pl.pallas_call(
            kernel,
            out_shape=jax.ShapeDtypeStruct((padded_tokens, d_model), out_dtype),
            grid_spec=grid_spec,
            compiler_params=pltpu.CompilerParams(
                dimension_semantics=dims,
                vmem_limit_bytes=vmem_limit,
            ),
            cost_estimate=cost,
        )(x2, w1, w2)

    if single_k:
        try:
            out2 = _run(single_buffer_weights=True)
        except Exception:
            # pl.Buffered(1) rejected by this JAX/libtpu combo: fall back to
            # default double-buffering (only costs extra resident VMEM).
            out2 = _run(single_buffer_weights=False)
    else:
        out2 = _run(single_buffer_weights=False)

    out2 = out2[:tokens]
    return out2.reshape(B, S, d_model)


def reference(x, w1, w2, eps=1e-5):
    h = jnp.maximum(jnp.einsum("bsd,df->bsf", x, w1), 0.0)
    y = jnp.einsum("bsf,fd->bsd", h, w2) + x
    mean = jnp.mean(y, axis=-1, keepdims=True)
    var = jnp.mean((y - mean) ** 2, axis=-1, keepdims=True)
    return (y - mean) * jax.lax.rsqrt(var + eps)


if __name__ == "__main__":
    # Small shapes consistent with the module's forward: [batch, seq, d_model]
    batch, seq, d_model, d_ff = 2, 8, 128, 256

    key = jax.random.PRNGKey(0)
    kx, k1, k2 = jax.random.split(key, 3)

    x = jax.random.normal(kx, (batch, seq, d_model), dtype=jnp.float32)
    # PyTorch nn.Linear stores weight as [out, in]; we keep [in, out] for x @ W.
    w1 = jax.random.uniform(k1, (d_model, d_ff), dtype=jnp.float32,
                            minval=-1.0, maxval=1.0) / jnp.sqrt(d_model)
    w2 = jax.random.uniform(k2, (d_ff, d_model), dtype=jnp.float32,
                            minval=-1.0, maxval=1.0) / jnp.sqrt(d_ff)

    out = poswise_ffn(x, w1, w2)
    out = jax.block_until_ready(out)

    ref = reference(x, w1, w2)
    assert out.shape == (batch, seq, d_model)
    assert jnp.allclose(out, ref, atol=1e-4, rtol=1e-4), "mismatch vs reference"

    print("KERNEL_OK")
</pallas_src>

<mosaic_0001>
module attributes {stable_mosaic.version = 11 : i64} {
  func.func @_ffn_ln_single_kernel(%arg0: i32, %arg1: memref<16x128xf32, #tpu.memory_space<vmem>>, %arg2: memref<128x256xf32, #tpu.memory_space<vmem>>, %arg3: memref<256x128xf32, #tpu.memory_space<vmem>>, %arg4: memref<16x128xf32, #tpu.memory_space<vmem>>) attributes {dimension_semantics = [#tpu.dimension_semantics<parallel>], iteration_bounds = array<i64: 1>, scalar_prefetch = 0 : i64, scratch_operands = 0 : i64, tpu.core_type = #tpu.core_type<tc>, window_params = [{transform_indices = @transform_0, window_bounds = array<i64: 16, 128>}, {pipeline_mode = #tpu.pipeline_mode<synchronous>, transform_indices = @transform_1, window_bounds = array<i64: 128, 256>}, {pipeline_mode = #tpu.pipeline_mode<synchronous>, transform_indices = @transform_2, window_bounds = array<i64: 256, 128>}, {transform_indices = @transform_3, window_bounds = array<i64: 16, 128>}]} {
    %c0 = arith.constant 0 : index
    %c0_0 = arith.constant 0 : index
    %0 = vector.load %arg1[%c0, %c0_0] : memref<16x128xf32, #tpu.memory_space<vmem>>, vector<16x128xf32>
    %c0_1 = arith.constant 0 : index
    %c0_2 = arith.constant 0 : index
    %1 = vector.load %arg2[%c0_1, %c0_2] : memref<128x256xf32, #tpu.memory_space<vmem>>, vector<128x256xf32>
    %cst = arith.constant dense<0.000000e+00> : vector<16x256xf32>
    %2 = tpu.matmul %0, %1, %cst {dimension_numbers = #tpu.dot_dimension_numbers<[1], [0], [0], [1], [0, 0, 1, 1], [], []>} : vector<16x128xf32>, vector<128x256xf32>, vector<16x256xf32> -> vector<16x256xf32>
    %cst_3 = arith.constant 0.000000e+00 : f32
    %3 = vector.broadcast %cst_3 : f32 to vector<16x256xf32>
    %4 = arith.maximumf %2, %3 : vector<16x256xf32>
    %c0_4 = arith.constant 0 : index
    %c0_5 = arith.constant 0 : index
    %5 = vector.load %arg3[%c0_4, %c0_5] : memref<256x128xf32, #tpu.memory_space<vmem>>, vector<256x128xf32>
    %cst_6 = arith.constant dense<0.000000e+00> : vector<16x128xf32>
    %6 = tpu.matmul %4, %5, %cst_6 {dimension_numbers = #tpu.dot_dimension_numbers<[1], [0], [0], [1], [0, 0, 1, 1], [], []>} : vector<16x256xf32>, vector<256x128xf32>, vector<16x128xf32> -> vector<16x128xf32>
    %7 = arith.addf %6, %0 : vector<16x128xf32>
    %cst_7 = arith.constant dense<0.000000e+00> : vector<16xf32>
    %8 = vector.multi_reduction <add>, %7, %cst_7 [1] : vector<16x128xf32> to vector<16xf32>
    %9 = vector.shape_cast %8 : vector<16xf32> to vector<16x1xf32>
    %10 = arith.mulf %7, %7 : vector<16x128xf32>
    %cst_8 = arith.constant dense<0.000000e+00> : vector<16xf32>
    %11 = vector.multi_reduction <add>, %10, %cst_8 [1] : vector<16x128xf32> to vector<16xf32>
    %12 = vector.shape_cast %11 : vector<16xf32> to vector<16x1xf32>
    %cst_9 = arith.constant 7.812500e-03 : f32
    %13 = vector.broadcast %cst_9 : f32 to vector<16x1xf32>
    %14 = arith.mulf %9, %13 : vector<16x1xf32>
    %cst_10 = arith.constant 7.812500e-03 : f32
    %15 = vector.broadcast %cst_10 : f32 to vector<16x1xf32>
    %16 = arith.mulf %12, %15 : vector<16x1xf32>
    %17 = arith.mulf %14, %14 : vector<16x1xf32>
    %18 = arith.subf %16, %17 : vector<16x1xf32>
    %cst_11 = arith.constant 0.000000e+00 : f32
    %19 = vector.broadcast %cst_11 : f32 to vector<16x1xf32>
    %20 = arith.maximumf %18, %19 : vector<16x1xf32>
    %21 = vector.broadcast %14 : vector<16x1xf32> to vector<16x128xf32>
    %22 = arith.subf %7, %21 : vector<16x128xf32>
    %cst_12 = arith.constant 9.99999974E-6 : f32
    %23 = vector.broadcast %cst_12 : f32 to vector<16x1xf32>
    %24 = arith.addf %20, %23 : vector<16x1xf32>
    %25 = math.rsqrt %24 : vector<16x1xf32>
    %26 = vector.broadcast %25 : vector<16x1xf32> to vector<16x128xf32>
    %27 = arith.mulf %22, %26 : vector<16x128xf32>
    %c0_13 = arith.constant 0 : index
    %c0_14 = arith.constant 0 : index
    %28 = vector.load %arg4[%c0_13, %c0_14] : memref<16x128xf32, #tpu.memory_space<vmem>>, vector<16x128xf32>
    tpu.vector_store %arg4[%c0_13, %c0_14], %27 {strides = array<i32>} : memref<16x128xf32, #tpu.memory_space<vmem>>, vector<16x128xf32>,
    return
  }
  func.func @transform_0(%arg0: i32) -> (i32, i32) {
    %c0_i32 = arith.constant 0 : i32
    %c0_i32_0 = arith.constant 0 : i32
    return %arg0, %c0_i32 : i32, i32
  }
  func.func @transform_1(%arg0: i32) -> (i32, i32) {
    %c0_i32 = arith.constant 0 : i32
    %c0_i32_0 = arith.constant 0 : i32
    %c0_i32_1 = arith.constant 0 : i32
    return %c0_i32, %c0_i32_0 : i32, i32
  }
  func.func @transform_2(%arg0: i32) -> (i32, i32) {
    %c0_i32 = arith.constant 0 : i32
    %c0_i32_0 = arith.constant 0 : i32
    %c0_i32_1 = arith.constant 0 : i32
    return %c0_i32, %c0_i32_0 : i32, i32
  }
  func.func @transform_3(%arg0: i32) -> (i32, i32) {
    %c0_i32 = arith.constant 0 : i32
    %c0_i32_0 = arith.constant 0 : i32
    return %arg0, %c0_i32 : i32, i32
  }
}

module attributes {stable_mosaic.version = 11 : i64} {
  func.func @_ffn_ln_single_kernel(%arg0: i32, %arg1: memref<16x128xf32, #tpu.memory_space<vmem>>, %arg2: memref<128x256xf32, #tpu.memory_space<vmem>>, %arg3: memref<256x128xf32, #tpu.memory_space<vmem>>, %arg4: memref<16x128xf32, #tpu.memory_space<vmem>>) attributes {dimension_semantics = [#tpu.dimension_semantics<parallel>], iteration_bounds = array<i64: 1>, scalar_prefetch = 0 : i64, scratch_operands = 0 : i64, tpu.core_type = #tpu.core_type<tc>, window_params = [{transform_indices = @transform_0, window_bounds = array<i64: 16, 128>}, {pipeline_mode = #tpu.pipeline_mode<synchronous>, transform_indices = @transform_1, window_bounds = array<i64: 128, 256>}, {pipeline_mode = #tpu.pipeline_mode<synchronous>, transform_indices = @transform_2, window_bounds = array<i64: 256, 128>}, {transform_indices = @transform_3, window_bounds = array<i64: 16, 128>}]} {
    %c0 = arith.constant 0 : index
    %c0_0 = arith.constant 0 : index
    %0 = vector.load %arg1[%c0, %c0_0] : memref<16x128xf32, #tpu.memory_space<vmem>>, vector<16x128xf32>
    %c0_1 = arith.constant 0 : index
    %c0_2 = arith.constant 0 : index
    %1 = vector.load %arg2[%c0_1, %c0_2] : memref<128x256xf32, #tpu.memory_space<vmem>>, vector<128x256xf32>
    %cst = arith.constant dense<0.000000e+00> : vector<16x256xf32>
    %2 = tpu.matmul %0, %1, %cst {dimension_numbers = #tpu.dot_dimension_numbers<[1], [0], [0], [1], [0, 0, 1, 1], [], []>} : vector<16x128xf32>, vector<128x256xf32>, vector<16x256xf32> -> vector<16x256xf32>
    %cst_3 = arith.constant 0.000000e+00 : f32
    %3 = vector.broadcast %cst_3 : f32 to vector<16x256xf32>
    %4 = arith.maximumf %2, %3 : vector<16x256xf32>
    %c0_4 = arith.constant 0 : index
    %c0_5 = arith.constant 0 : index
    %5 = vector.load %arg3[%c0_4, %c0_5] : memref<256x128xf32, #tpu.memory_space<vmem>>, vector<256x128xf32>
    %cst_6 = arith.constant dense<0.000000e+00> : vector<16x128xf32>
    %6 = tpu.matmul %4, %5, %cst_6 {dimension_numbers = #tpu.dot_dimension_numbers<[1], [0], [0], [1], [0, 0, 1, 1], [], []>} : vector<16x256xf32>, vector<256x128xf32>, vector<16x128xf32> -> vector<16x128xf32>
    %7 = arith.addf %6, %0 : vector<16x128xf32>
    %cst_7 = arith.constant dense<0.000000e+00> : vector<16xf32>
    %8 = vector.multi_reduction <add>, %7, %cst_7 [1] : vector<16x128xf32> to vector<16xf32>
    %9 = vector.shape_cast %8 : vector<16xf32> to vector<16x1xf32>
    %10 = arith.mulf %7, %7 : vector<16x128xf32>
    %cst_8 = arith.constant dense<0.000000e+00> : vector<16xf32>
    %11 = vector.multi_reduction <add>, %10, %cst_8 [1] : vector<16x128xf32> to vector<16xf32>
    %12 = vector.shape_cast %11 : vector<16xf32> to vector<16x1xf32>
    %cst_9 = arith.constant 7.812500e-03 : f32
    %13 = vector.broadcast %cst_9 : f32 to vector<16x1xf32>
    %14 = arith.mulf %9, %13 : vector<16x1xf32>
    %cst_10 = arith.constant 7.812500e-03 : f32
    %15 = vector.broadcast %cst_10 : f32 to vector<16x1xf32>
    %16 = arith.mulf %12, %15 : vector<16x1xf32>
    %17 = arith.mulf %14, %14 : vector<16x1xf32>
    %18 = arith.subf %16, %17 : vector<16x1xf32>
    %cst_11 = arith.constant 0.000000e+00 : f32
    %19 = vector.broadcast %cst_11 : f32 to vector<16x1xf32>
    %20 = arith.maximumf %18, %19 : vector<16x1xf32>
    %21 = vector.broadcast %14 : vector<16x1xf32> to vector<16x128xf32>
    %22 = arith.subf %7, %21 : vector<16x128xf32>
    %cst_12 = arith.constant 9.99999974E-6 : f32
    %23 = vector.broadcast %cst_12 : f32 to vector<16x1xf32>
    %24 = arith.addf %20, %23 : vector<16x1xf32>
    %25 = math.rsqrt %24 : vector<16x1xf32>
    %26 = vector.broadcast %25 : vector<16x1xf32> to vector<16x128xf32>
    %27 = arith.mulf %22, %26 : vector<16x128xf32>
    %c0_13 = arith.constant 0 : index
    %c0_14 = arith.constant 0 : index
    %28 = vector.load %arg4[%c0_13, %c0_14] : memref<16x128xf32, #tpu.memory_space<vmem>>, vector<16x128xf32>
    tpu.vector_store %arg4[%c0_13, %c0_14], %27 {strides = array<i32>} : memref<16x128xf32, #tpu.memory_space<vmem>>, vector<16x128xf32>,
    return
  }
  func.func @transform_0(%arg0: i32) -> (i32, i32) {
    %c0_i32 = arith.constant 0 : i32
    %c0_i32_0 = arith.constant 0 : i32
    return %arg0, %c0_i32 : i32, i32
  }
  func.func @transform_1(%arg0: i32) -> (i32, i32) {
    %c0_i32 = arith.constant 0 : i32
    %c0_i32_0 = arith.constant 0 : i32
    %c0_i32_1 = arith.constant 0 : i32
    return %c0_i32, %c0_i32_0 : i32, i32
  }
  func.func @transform_2(%arg0: i32) -> (i32, i32) {
    %c0_i32 = arith.constant 0 : i32
    %c0_i32_0 = arith.constant 0 : i32
    %c0_i32_1 = arith.constant 0 : i32
    return %c0_i32, %c0_i32_0 : i32, i32
  }
  func.func @transform_3(%arg0: i32) -> (i32, i32) {
    %c0_i32 = arith.constant 0 : i32
    %c0_i32_0 = arith.constant 0 : i32
    return %arg0, %c0_i32 : i32, i32
  }
}

</mosaic_0001>

<llo_original>
// kernel: tpu_custom_call.1
$region0: #{tpu_custom_call.1}
  #allocation0 [shape = 'u32[]', space=smem, size = 0x4, offset = 0x4, fixed_abs, tag = 'smem constant byte address 0x4 - core index']
  #allocation1 [shape = 'u32[144,128]{1,0:T(1,128)}', space=vmem, size = 0x12000, scoped, tag = 'internal scratch']
  %s0 = inlined_call_operand.hbm [shape: f32[16,128], index: 0, kind: input, shape index: {}]
  %s1 = inlined_call_operand.hbm [shape: f32[128,256], index: 1, kind: input, shape index: {}]
  %s2 = inlined_call_operand.hbm [shape: f32[256,128], index: 2, kind: input, shape index: {}]
  %s3 = inlined_call_operand.hbm [shape: f32[16,128], index: 3, kind: output, shape index: {}]
  %s4 = sld [smem:[#allocation0]]
  $region34: #{tpu_custom_call.1} parent=0
    _
  %s6 = ssub.s32 1, %s4
  %s7 = scalar_select 0, %s6, %s4
  $region1: #{tpu_custom_call.1} parent=0
    #allocation2 [shape = 'u8[8192]{0}', space=vmem, size = 0x2000, scoped, tag = 'input window, operand 0, single buffered']
    #allocation3 [shape = 's32[1]{0}', space=sflag, size = 0x4, scoped, tag = 'scoped memory for tpu_custom_call.1']
    #allocation4 [shape = 's32[1]{0}', space=sflag, size = 0x4, scoped, tag = 'scoped memory for tpu_custom_call.1']
    #allocation5 [shape = 'u8[131072]{0}', space=vmem, size = 0x20000, scoped, tag = 'input window, operand 1, single buffered']
    #allocation6 [shape = 's32[1]{0}', space=sflag, size = 0x4, scoped, tag = 'scoped memory for tpu_custom_call.1']
    #allocation7 [shape = 'u8[131072]{0}', space=vmem, size = 0x20000, scoped, tag = 'input window, operand 2, single buffered']
    #allocation8 [shape = 'u8[8192]{0}', space=vmem, size = 0x2000, scoped, tag = 'output window, operand 0, single buffered']
    %8 = vsyncpa [#allocation3], 0
    %9 = vsyncpa [#allocation6], 0
    %10 = vsyncpa [#allocation4], 0
    // Predicated region
    $region2: #{tpu_custom_call.1} parent=1 // pred_check
      _
    $region3: #{tpu_custom_call.1} parent=1 // pred_check_branch
      %12 = sbr.rel (0) target = $region5
    $region4: #{tpu_custom_call.1} parent=1 // pred_region
      %s14 = ssub.s32 256, 256
      %15 = vsyncadd [#allocation3], %s14
      %s16 = sshll.u32 [#allocation2], 4
      %s17 = int_to_ptr.vmem [resolvable:$true] %s16
      %22 = dma.hbm_to_vmem [thread:$0]  %s0, 256, %s17, [#allocation3], 128, 128, 8
    $region5: #{tpu_custom_call.1} parent=1 // pred_fallthru
      _
    // Predicated region
    $region6: #{tpu_custom_call.1} parent=1 // pred_check
      _
    $region7: #{tpu_custom_call.1} parent=1 // pred_check_branch
      %24 = sbr.rel (0) target = $region9
    $region8: #{tpu_custom_call.1} parent=1 // pred_region
      %s26 = ssub.s32 4096, 4096
      %27 = vsyncadd [#allocation6], %s26
      %s28 = sshll.u32 [#allocation5], 4
      %s29 = int_to_ptr.vmem [resolvable:$true] %s28
      %34 = dma.hbm_to_vmem [thread:$0]  %s1, 4096, %s29, [#allocation6], 256, 256, 16
    $region9: #{tpu_custom_call.1} parent=1 // pred_fallthru
      _
    // Predicated region
    $region10: #{tpu_custom_call.1} parent=1 // pred_check
      _
    $region11: #{tpu_custom_call.1} parent=1 // pred_check_branch
      %36 = sbr.rel (0) target = $region13
    $region12: #{tpu_custom_call.1} parent=1 // pred_region
      %s38 = ssub.s32 4096, 4096
      %39 = vsyncadd [#allocation6], %s38
      %s40 = sshll.u32 [#allocation7], 4
      %s41 = int_to_ptr.vmem [resolvable:$true] %s40
      %46 = dma.hbm_to_vmem [thread:$0]  %s2, 4096, %s41, [#allocation6], 128, 128, 8
    $region13: #{tpu_custom_call.1} parent=1 // pred_fallthru
      _
    // Predicated region
    $region14: #{tpu_custom_call.1} parent=1 // pred_check
      _
    $region15: #{tpu_custom_call.1} parent=1 // pred_check_branch
      %48 = sbr.rel (0) target = $region17
    $region16: #{tpu_custom_call.1} parent=1 // pred_region
      %49 = dma.done [#allocation3], 256
    $region17: #{tpu_custom_call.1} parent=1 // pred_fallthru
      _
    // Predicated region
    $region18: #{tpu_custom_call.1} parent=1 // pred_check
      _
    $region19: #{tpu_custom_call.1} parent=1 // pred_check_branch
      %51 = sbr.rel (0) target = $region21
    $region20: #{tpu_custom_call.1} parent=1 // pred_region
      %52 = dma.done [#allocation6], 4096
    $region21: #{tpu_custom_call.1} parent=1 // pred_fallthru
      _
    // Predicated region
    $region22: #{tpu_custom_call.1} parent=1 // pred_check
      _
    $region23: #{tpu_custom_call.1} parent=1 // pred_check_branch
      %54 = sbr.rel (0) target = $region25
    $region24: #{tpu_custom_call.1} parent=1 // pred_region
      %55 = dma.done [#allocation6], 4096
    $region25: #{tpu_custom_call.1} parent=1 // pred_fallthru
      _
    %v56 = vld [vmem:[#allocation2] sm:$0xff]
    %v57 = vld [vmem:[#allocation2 + $0x8] sm:$0xff]
    %v58 = vld [vmem:[#allocation5] sm:$0xff]
    %v59 = vld [vmem:[#allocation5 + $0x8] sm:$0xff]
    %v60 = vld [vmem:[#allocation5 + $0x10] sm:$0xff]
    %v61 = vld [vmem:[#allocation5 + $0x18] sm:$0xff]
    %v62 = vld [vmem:[#allocation5 + $0x20] sm:$0xff]
    %v63 = vld [vmem:[#allocation5 + $0x28] sm:$0xff]
    %v64 = vld [vmem:[#allocation5 + $0x30] sm:$0xff]
    %v65 = vld [vmem:[#allocation5 + $0x38] sm:$0xff]
    %v66 = vld [vmem:[#allocation5 + $0x40] sm:$0xff]
    %v67 = vld [vmem:[#allocation5 + $0x48] sm:$0xff]
    %v68 = vld [vmem:[#allocation5 + $0x50] sm:$0xff]
    %v69 = vld [vmem:[#allocation5 + $0x58] sm:$0xff]
    %v70 = vld [vmem:[#allocation5 + $0x60] sm:$0xff]
    %v71 = vld [vmem:[#allocation5 + $0x68] sm:$0xff]
    %v72 = vld [vmem:[#allocation5 + $0x70] sm:$0xff]
    %v73 = vld [vmem:[#allocation5 + $0x78] sm:$0xff]
    %v74 = vld [vmem:[#allocation5 + $0x80] sm:$0xff]
    %v75 = vld [vmem:[#allocation5 + $0x88] sm:$0xff]
    %v76 = vld [vmem:[#allocation5 + $0x90] sm:$0xff]
    %v77 = vld [vmem:[#allocation5 + $0x98] sm:$0xff]
    %v78 = vld [vmem:[#allocation5 + $0xa0] sm:$0xff]
    %v79 = vld [vmem:[#allocation5 + $0xa8] sm:$0xff]
    %v80 = vld [vmem:[#allocation5 + $0xb0] sm:$0xff]
    %v81 = vld [vmem:[#allocation5 + $0xb8] sm:$0xff]
    %v82 = vld [vmem:[#allocation5 + $0xc0] sm:$0xff]
    %v83 = vld [vmem:[#allocation5 + $0xc8] sm:$0xff]
    %v84 = vld [vmem:[#allocation5 + $0xd0] sm:$0xff]
    %v85 = vld [vmem:[#allocation5 + $0xd8] sm:$0xff]
    %v86 = vld [vmem:[#allocation5 + $0xe0] sm:$0xff]
    %v87 = vld [vmem:[#allocation5 + $0xe8] sm:$0xff]
    %v88 = vld [vmem:[#allocation5 + $0xf0] sm:$0xff]
    %v89 = vld [vmem:[#allocation5 + $0xf8] sm:$0xff]
    %90 = vmatprep.subr.mxu0 %v59
    %91 = vmatpush1.msra.mxu0 %v58
    %92 = vmatprep.subr.mxu0 %v61
    %93 = vmatpush1.msra.mxu0 %v60
    %94 = vmatprep.subr.mxu0 %v63
    %95 = vmatpush1.msra.mxu0 %v62
    %96 = vmatprep.subr.mxu0 %v65
    %97 = vmatpush1.msra.mxu0 %v64
    %98 = vmatprep.subr.mxu0 %v67
    %99 = vmatpush1.msra.mxu0 %v66
    %100 = vmatprep.subr.mxu0 %v69
    %101 = vmatpush1.msra.mxu0 %v68
    %102 = vmatprep.subr.mxu0 %v71
    %103 = vmatpush1.msra.mxu0 %v70
    %104 = vmatprep.subr.mxu0 %v73
    %105 = vmatpush1.msra.mxu0 %v72
    %106 = vmatprep.subr.mxu0 %v75
    %107 = vmatpush1.msra.mxu0 %v74
    %108 = vmatprep.subr.mxu0 %v77
    %109 = vmatpush1.msra.mxu0 %v76
    %110 = vmatprep.subr.mxu0 %v79
    %111 = vmatpush1.msra.mxu0 %v78
    %112 = vmatprep.subr.mxu0 %v81
    %113 = vmatpush1.msra.mxu0 %v80
    %114 = vmatprep.subr.mxu0 %v83
    %115 = vmatpush1.msra.mxu0 %v82
    %116 = vmatprep.subr.mxu0 %v85
    %117 = vmatpush1.msra.mxu0 %v84
    %118 = vmatprep.subr.mxu0 %v87
    %119 = vmatpush1.msra.mxu0 %v86
    %120 = vmatprep.subr.mxu0 %v89
    %121 = vmatpush1.msra.mxu0 %v88
    %122 = vmatprep.subr.mxu0 0.0
    %123 = vmatpush1.msra.mxu0 0.0
    %124 = vmatprep.subr.mxu0 0.0
    %125 = vmatpush1.msra.mxu0 0.0
    %126 = vmatprep.subr.mxu0 0.0
    %127 = vmatpush1.msra.mxu0 0.0
    %128 = vmatprep.subr.mxu0 0.0
    %129 = vmatpush1.msra.mxu0 0.0
    %130 = vmatprep.subr.mxu0 0.0
    %131 = vmatpush1.msra.mxu0 0.0
    %132 = vmatprep.subr.mxu0 0.0
    %133 = vmatpush1.msra.mxu0 0.0
    %134 = vmatprep.subr.mxu0 0.0
    %135 = vmatpush1.msra.mxu0 0.0
    %136 = vmatprep.subr.mxu0 0.0
    %137 = vmatpush1.msra.mxu0 0.0
    %138 = vmatprep.subr.mxu0 0.0
    %139 = vmatpush1.msra.mxu0 0.0
    %140 = vmatprep.subr.mxu0 0.0
    %141 = vmatpush1.msra.mxu0 0.0
    %142 = vmatprep.subr.mxu0 0.0
    %143 = vmatpush1.msra.mxu0 0.0
    %144 = vmatprep.subr.mxu0 0.0
    %145 = vmatpush1.msra.mxu0 0.0
    %146 = vmatprep.subr.mxu0 0.0
    %147 = vmatpush1.msra.mxu0 0.0
    %148 = vmatprep.subr.mxu0 0.0
    %149 = vmatpush1.msra.mxu0 0.0
    %150 = vmatprep.subr.mxu0 0.0
    %151 = vmatpush1.msra.mxu0 0.0
    %152 = vmatprep.subr.mxu0 0.0
    %153 = vmatpush1.msra.mxu0 0.0
    %154 = vmatprep.mubr.f32.mxu0 0.0
    %155 = vmatmul.mubr.f32.gmra.mrb[0].mxu0 %v56
    %v156 = vpop.f32.mrb[0].mxu0
    %v157 = vadd.f32 0.0, %v156
    %v158 = vpop.f32.mrb[0].mxu0
    %v159 = vadd.f32 0.0, %v158
    %160 = vmatprep.mubr.f32.mxu0 0.0
    %161 = vmatmul.mubr.f32.gmra.mrb[0].mxu0 %v57
    %v162 = vpop.f32.mrb[0].mxu0
    %v163 = vadd.f32 0.0, %v162
    %v164 = vpop.f32.mrb[0].mxu0
    %v165 = vadd.f32 0.0, %v164
    %166 = vdwg.mxu0
    %v167 = vmax.f32 %v157, 0.0
    %v168 = vmax.f32 %v159, 0.0
    %v169 = vmax.f32 %v163, 0.0
    %v170 = vmax.f32 %v165, 0.0
    %v171 = vld [vmem:[#allocation7] sm:$0xff]
    %v172 = vld [vmem:[#allocation7 + $0x8] sm:$0xff]
    %v173 = vld [vmem:[#allocation7 + $0x10] sm:$0xff]
    %v174 = vld [vmem:[#allocation7 + $0x18] sm:$0xff]
    %v175 = vld [vmem:[#allocation7 + $0x20] sm:$0xff]
    %v176 = vld [vmem:[#allocation7 + $0x28] sm:$0xff]
    %v177 = vld [vmem:[#allocation7 + $0x30] sm:$0xff]
    %v178 = vld [vmem:[#allocation7 + $0x38] sm:$0xff]
    %v179 = vld [vmem:[#allocation7 + $0x40] sm:$0xff]
    %v180 = vld [vmem:[#allocation7 + $0x48] sm:$0xff]
    %v181 = vld [vmem:[#allocation7 + $0x50] sm:$0xff]
    %v182 = vld [vmem:[#allocation7 + $0x58] sm:$0xff]
    %v183 = vld [vmem:[#allocation7 + $0x60] sm:$0xff]
    %v184 = vld [vmem:[#allocation7 + $0x68] sm:$0xff]
    %v185 = vld [vmem:[#allocation7 + $0x70] sm:$0xff]
    %v186 = vld [vmem:[#allocation7 + $0x78] sm:$0xff]
    %v187 = vld [vmem:[#allocation7 + $0x80] sm:$0xff]
    %v188 = vld [vmem:[#allocation7 + $0x88] sm:$0xff]
    %v189 = vld [vmem:[#allocation7 + $0x90] sm:$0xff]
    %v190 = vld [vmem:[#allocation7 + $0x98] sm:$0xff]
    %v191 = vld [vmem:[#allocation7 + $0xa0] sm:$0xff]
    %v192 = vld [vmem:[#allocation7 + $0xa8] sm:$0xff]
    %v193 = vld [vmem:[#allocation7 + $0xb0] sm:$0xff]
    %v194 = vld [vmem:[#allocation7 + $0xb8] sm:$0xff]
    %v195 = vld [vmem:[#allocation7 + $0xc0] sm:$0xff]
    %v196 = vld [vmem:[#allocation7 + $0xc8] sm:$0xff]
    %v197 = vld [vmem:[#allocation7 + $0xd0] sm:$0xff]
    %v198 = vld [vmem:[#allocation7 + $0xd8] sm:$0xff]
    %v199 = vld [vmem:[#allocation7 + $0xe0] sm:$0xff]
    %v200 = vld [vmem:[#allocation7 + $0xe8] sm:$0xff]
    %v201 = vld [vmem:[#allocation7 + $0xf0] sm:$0xff]
    %v202 = vld [vmem:[#allocation7 + $0xf8] sm:$0xff]
    %203 = vmatprep.subr.mxu0 0.0
    %204 = vmatpush1.msra.mxu0 %v171
    %205 = vmatprep.subr.mxu0 0.0
    %206 = vmatpush1.msra.mxu0 %v172
    %207 = vmatprep.subr.mxu0 0.0
    %208 = vmatpush1.msra.mxu0 %v173
    %209 = vmatprep.subr.mxu0 0.0
    %210 = vmatpush1.msra.mxu0 %v174
    %211 = vmatprep.subr.mxu0 0.0
    %212 = vmatpush1.msra.mxu0 %v175
    %213 = vmatprep.subr.mxu0 0.0
    %214 = vmatpush1.msra.mxu0 %v176
    %215 = vmatprep.subr.mxu0 0.0
    %216 = vmatpush1.msra.mxu0 %v177
    %217 = vmatprep.subr.mxu0 0.0
    %218 = vmatpush1.msra.mxu0 %v178
    %219 = vmatprep.subr.mxu0 0.0
    %220 = vmatpush1.msra.mxu0 %v179
    %221 = vmatprep.subr.mxu0 0.0
    %222 = vmatpush1.msra.mxu0 %v180
    %223 = vmatprep.subr.mxu0 0.0
    %224 = vmatpush1.msra.mxu0 %v181
    %225 = vmatprep.subr.mxu0 0.0
    %226 = vmatpush1.msra.mxu0 %v182
    %227 = vmatprep.subr.mxu0 0.0
    %228 = vmatpush1.msra.mxu0 %v183
    %229 = vmatprep.subr.mxu0 0.0
    %230 = vmatpush1.msra.mxu0 %v184
    %231 = vmatprep.subr.mxu0 0.0
    %232 = vmatpush1.msra.mxu0 %v185
    %233 = vmatprep.subr.mxu0 0.0
    %234 = vmatpush1.msra.mxu0 %v186
    %235 = vmatprep.subr.mxu0 0.0
    %236 = vmatpush1.msra.mxu0 %v187
    %237 = vmatprep.subr.mxu0 0.0
    %238 = vmatpush1.msra.mxu0 %v188
    %239 = vmatprep.subr.mxu0 0.0
    %240 = vmatpush1.msra.mxu0 %v189
    %241 = vmatprep.subr.mxu0 0.0
    %242 = vmatpush1.msra.mxu0 %v190
    %243 = vmatprep.subr.mxu0 0.0
    %244 = vmatpush1.msra.mxu0 %v191
    %245 = vmatprep.subr.mxu0 0.0
    %246 = vmatpush1.msra.mxu0 %v192
    %247 = vmatprep.subr.mxu0 0.0
    %248 = vmatpush1.msra.mxu0 %v193
    %249 = vmatprep.subr.mxu0 0.0
    %250 = vmatpush1.msra.mxu0 %v194
    %251 = vmatprep.subr.mxu0 0.0
    %252 = vmatpush1.msra.mxu0 %v195
    %253 = vmatprep.subr.mxu0 0.0
    %254 = vmatpush1.msra.mxu0 %v196
    %255 = vmatprep.subr.mxu0 0.0
    %256 = vmatpush1.msra.mxu0 %v197
    %257 = vmatprep.subr.mxu0 0.0
    %258 = vmatpush1.msra.mxu0 %v198
    %259 = vmatprep.subr.mxu0 0.0
    %260 = vmatpush1.msra.mxu0 %v199
    %261 = vmatprep.subr.mxu0 0.0
    %262 = vmatpush1.msra.mxu0 %v200
    %263 = vmatprep.subr.mxu0 0.0
    %264 = vmatpush1.msra.mxu0 %v201
    %265 = vmatprep.subr.mxu0 0.0
    %266 = vmatpush1.msra.mxu0 %v202
    %267 = vmatprep.mubr.f32.mxu0 %v168
    %268 = vmatmul.mubr.f32.gmra.mrb[0].mxu0 %v167
    %v269 = vpop.f32.mrb[0].mxu0
    %v270 = vadd.f32 %v56, %v269
    %v271 = vpop.f32.mrb[0].mxu0
    %272 = vmatprep.mubr.f32.mxu0 %v170
    %273 = vmatmul.mubr.f32.gmra.mrb[0].mxu0 %v169
    %v274 = vpop.f32.mrb[0].mxu0
    %v275 = vadd.f32 %v57, %v274
    %v276 = vpop.f32.mrb[0].mxu0
    %277 = vdwg.mxu0
    %278 = vadd.xlane.f32.xlu0 %v270
    %v279 = vpop.xlane.xlu0 %278
    %280 = vadd.xlane.f32.xlu0 %v275
    %v281 = vpop.xlane.xlu0 %280
    %v282 = vmul.f32 %v270, %v270
    %v283 = vmul.f32 %v275, %v275
    %284 = vadd.xlane.f32.xlu0 %v282
    %v285 = vpop.xlane.xlu0 %284
    %286 = vadd.xlane.f32.xlu0 %v283
    %v287 = vpop.xlane.xlu0 %286
    %v288 = vmul.f32 %v279, 0.0078125
    %v289 = vmul.f32 %v281, 0.0078125
    %v290 = vmul.f32 %v285, 0.0078125
    %v291 = vmul.f32 %v287, 0.0078125
    %v292 = vmul.f32 %v288, %v288
    %v293 = vmul.f32 %v289, %v289
    %v294 = vsub.f32 %v290, %v292
    %v295 = vsub.f32 %v291, %v293
    %v296 = vmax.f32 %v294, 0.0
    %v297 = vmax.f32 %v295, 0.0
    %v298 = vsub.f32 %v270, %v288
    %v299 = vsub.f32 %v275, %v289
    %v300 = vadd.f32 %v296, 1e-05
    %v301 = vadd.f32 %v297, 1e-05
    %v302 = vrsqrt.pop %v300
    %v303 = vrsqrt.pop %v301
    %v304 = vmul.f32 %v298, %v302
    %v305 = vmul.f32 %v299, %v303
    %306 = vst [vmem:[#allocation8] sm:$0xff] %v304
    %307 = vst [vmem:[#allocation8 + $0x8] sm:$0xff] %v305
    // Predicated region
    $region26: #{tpu_custom_call.1} parent=1 // pred_check
      _
    $region27: #{tpu_custom_call.1} parent=1 // pred_check_branch
      %309 = sbr.rel (0) target = $region29
    $region28: #{tpu_custom_call.1} parent=1 // pred_region
      %s311 = ssub.s32 256, 256
      %312 = vsyncadd [#allocation4], %s311
      %s313 = sshll.u32 [#allocation8], 4
      %s314 = int_to_ptr.vmem [resolvable:$true] %s313
      %319 = dma.vmem_to_hbm [thread:$0]  %s314, 256, %s3, [#allocation4], 128, 128, 8
    $region29: #{tpu_custom_call.1} parent=1 // pred_fallthru
      _
    // Predicated region
    $region30: #{tpu_custom_call.1} parent=1 // pred_check
      _
    $region31: #{tpu_custom_call.1} parent=1 // pred_check_branch
      %321 = sbr.rel (0) target = $region33
    $region32: #{tpu_custom_call.1} parent=1 // pred_region
      %322 = dma.done [#allocation4], 256
    $region33: #{tpu_custom_call.1} parent=1 // pred_fallthru
      _
    %323 = vsyncpa [#allocation3], 1
    %324 = vsyncpa [#allocation6], 1
    %325 = vsyncpa [#allocation4], 1

// kernel: tpu_custom_call.1
$region0: #{tpu_custom_call.1}
  #allocation0 [shape = 'u32[]', space=smem, size = 0x4, offset = 0x4, fixed_abs, tag = 'smem constant byte address 0x4 - core index']
  #allocation1 [shape = 'u32[144,128]{1,0:T(1,128)}', space=vmem, size = 0x12000, scoped, tag = 'internal scratch']
  %s0 = inlined_call_operand.hbm [shape: f32[16,128], index: 0, kind: input, shape index: {}]
  %s1 = inlined_call_operand.hbm [shape: f32[128,256], index: 1, kind: input, shape index: {}]
  %s2 = inlined_call_operand.hbm [shape: f32[256,128], index: 2, kind: input, shape index: {}]
  %s3 = inlined_call_operand.hbm [shape: f32[16,128], index: 3, kind: output, shape index: {}]
  %s4 = sld [smem:[#allocation0]]
  $region34: #{tpu_custom_call.1} parent=0
    _
  %s6 = ssub.s32 1, %s4
  %s7 = scalar_select 0, %s6, %s4
  $region1: #{tpu_custom_call.1} parent=0
    #allocation2 [shape = 'u8[8192]{0}', space=vmem, size = 0x2000, scoped, tag = 'input window, operand 0, single buffered']
    #allocation3 [shape = 's32[1]{0}', space=sflag, size = 0x4, scoped, tag = 'scoped memory for tpu_custom_call.1']
    #allocation4 [shape = 's32[1]{0}', space=sflag, size = 0x4, scoped, tag = 'scoped memory for tpu_custom_call.1']
    #allocation5 [shape = 'u8[131072]{0}', space=vmem, size = 0x20000, scoped, tag = 'input window, operand 1, single buffered']
    #allocation6 [shape = 's32[1]{0}', space=sflag, size = 0x4, scoped, tag = 'scoped memory for tpu_custom_call.1']
    #allocation7 [shape = 'u8[131072]{0}', space=vmem, size = 0x20000, scoped, tag = 'input window, operand 2, single buffered']
    #allocation8 [shape = 'u8[8192]{0}', space=vmem, size = 0x2000, scoped, tag = 'output window, operand 0, single buffered']
    %8 = vsyncpa [#allocation3], 0
    %9 = vsyncpa [#allocation6], 0
    %10 = vsyncpa [#allocation4], 0
    // Predicated region
    $region2: #{tpu_custom_call.1} parent=1 // pred_check
      _
    $region3: #{tpu_custom_call.1} parent=1 // pred_check_branch
      %12 = sbr.rel (0) target = $region5
    $region4: #{tpu_custom_call.1} parent=1 // pred_region
      %s14 = ssub.s32 256, 256
      %15 = vsyncadd [#allocation3], %s14
      %s16 = sshll.u32 [#allocation2], 4
      %s17 = int_to_ptr.vmem [resolvable:$true] %s16
      %22 = dma.hbm_to_vmem [thread:$0]  %s0, 256, %s17, [#allocation3], 128, 128, 8
    $region5: #{tpu_custom_call.1} parent=1 // pred_fallthru
      _
    // Predicated region
    $region6: #{tpu_custom_call.1} parent=1 // pred_check
      _
    $region7: #{tpu_custom_call.1} parent=1 // pred_check_branch
      %24 = sbr.rel (0) target = $region9
    $region8: #{tpu_custom_call.1} parent=1 // pred_region
      %s26 = ssub.s32 4096, 4096
      %27 = vsyncadd [#allocation6], %s26
      %s28 = sshll.u32 [#allocation5], 4
      %s29 = int_to_ptr.vmem [resolvable:$true] %s28
      %34 = dma.hbm_to_vmem [thread:$0]  %s1, 4096, %s29, [#allocation6], 256, 256, 16
    $region9: #{tpu_custom_call.1} parent=1 // pred_fallthru
      _
    // Predicated region
    $region10: #{tpu_custom_call.1} parent=1 // pred_check
      _
    $region11: #{tpu_custom_call.1} parent=1 // pred_check_branch
      %36 = sbr.rel (0) target = $region13
    $region12: #{tpu_custom_call.1} parent=1 // pred_region
      %s38 = ssub.s32 4096, 4096
      %39 = vsyncadd [#allocation6], %s38
      %s40 = sshll.u32 [#allocation7], 4
      %s41 = int_to_ptr.vmem [resolvable:$true] %s40
      %46 = dma.hbm_to_vmem [thread:$0]  %s2, 4096, %s41, [#allocation6], 128, 128, 8
    $region13: #{tpu_custom_call.1} parent=1 // pred_fallthru
      _
    // Predicated region
    $region14: #{tpu_custom_call.1} parent=1 // pred_check
      _
    $region15: #{tpu_custom_call.1} parent=1 // pred_check_branch
      %48 = sbr.rel (0) target = $region17
    $region16: #{tpu_custom_call.1} parent=1 // pred_region
      %49 = dma.done [#allocation3], 256
    $region17: #{tpu_custom_call.1} parent=1 // pred_fallthru
      _
    // Predicated region
    $region18: #{tpu_custom_call.1} parent=1 // pred_check
      _
    $region19: #{tpu_custom_call.1} parent=1 // pred_check_branch
      %51 = sbr.rel (0) target = $region21
    $region20: #{tpu_custom_call.1} parent=1 // pred_region
      %52 = dma.done [#allocation6], 4096
    $region21: #{tpu_custom_call.1} parent=1 // pred_fallthru
      _
    // Predicated region
    $region22: #{tpu_custom_call.1} parent=1 // pred_check
      _
    $region23: #{tpu_custom_call.1} parent=1 // pred_check_branch
      %54 = sbr.rel (0) target = $region25
    $region24: #{tpu_custom_call.1} parent=1 // pred_region
      %55 = dma.done [#allocation6], 4096
    $region25: #{tpu_custom_call.1} parent=1 // pred_fallthru
      _
    %v56 = vld [vmem:[#allocation2] sm:$0xff]
    %v57 = vld [vmem:[#allocation2 + $0x8] sm:$0xff]
    %v58 = vld [vmem:[#allocation5] sm:$0xff]
    %v59 = vld [vmem:[#allocation5 + $0x8] sm:$0xff]
    %v60 = vld [vmem:[#allocation5 + $0x10] sm:$0xff]
    %v61 = vld [vmem:[#allocation5 + $0x18] sm:$0xff]
    %v62 = vld [vmem:[#allocation5 + $0x20] sm:$0xff]
    %v63 = vld [vmem:[#allocation5 + $0x28] sm:$0xff]
    %v64 = vld [vmem:[#allocation5 + $0x30] sm:$0xff]
    %v65 = vld [vmem:[#allocation5 + $0x38] sm:$0xff]
    %v66 = vld [vmem:[#allocation5 + $0x40] sm:$0xff]
    %v67 = vld [vmem:[#allocation5 + $0x48] sm:$0xff]
    %v68 = vld [vmem:[#allocation5 + $0x50] sm:$0xff]
    %v69 = vld [vmem:[#allocation5 + $0x58] sm:$0xff]
    %v70 = vld [vmem:[#allocation5 + $0x60] sm:$0xff]
    %v71 = vld [vmem:[#allocation5 + $0x68] sm:$0xff]
    %v72 = vld [vmem:[#allocation5 + $0x70] sm:$0xff]
    %v73 = vld [vmem:[#allocation5 + $0x78] sm:$0xff]
    %v74 = vld [vmem:[#allocation5 + $0x80] sm:$0xff]
    %v75 = vld [vmem:[#allocation5 + $0x88] sm:$0xff]
    %v76 = vld [vmem:[#allocation5 + $0x90] sm:$0xff]
    %v77 = vld [vmem:[#allocation5 + $0x98] sm:$0xff]
    %v78 = vld [vmem:[#allocation5 + $0xa0] sm:$0xff]
    %v79 = vld [vmem:[#allocation5 + $0xa8] sm:$0xff]
    %v80 = vld [vmem:[#allocation5 + $0xb0] sm:$0xff]
    %v81 = vld [vmem:[#allocation5 + $0xb8] sm:$0xff]
    %v82 = vld [vmem:[#allocation5 + $0xc0] sm:$0xff]
    %v83 = vld [vmem:[#allocation5 + $0xc8] sm:$0xff]
    %v84 = vld [vmem:[#allocation5 + $0xd0] sm:$0xff]
    %v85 = vld [vmem:[#allocation5 + $0xd8] sm:$0xff]
    %v86 = vld [vmem:[#allocation5 + $0xe0] sm:$0xff]
    %v87 = vld [vmem:[#allocation5 + $0xe8] sm:$0xff]
    %v88 = vld [vmem:[#allocation5 + $0xf0] sm:$0xff]
    %v89 = vld [vmem:[#allocation5 + $0xf8] sm:$0xff]
    %90 = vmatprep.subr.mxu0 %v59
    %91 = vmatpush1.msra.mxu0 %v58
    %92 = vmatprep.subr.mxu0 %v61
    %93 = vmatpush1.msra.mxu0 %v60
    %94 = vmatprep.subr.mxu0 %v63
    %95 = vmatpush1.msra.mxu0 %v62
    %96 = vmatprep.subr.mxu0 %v65
    %97 = vmatpush1.msra.mxu0 %v64
    %98 = vmatprep.subr.mxu0 %v67
    %99 = vmatpush1.msra.mxu0 %v66
    %100 = vmatprep.subr.mxu0 %v69
    %101 = vmatpush1.msra.mxu0 %v68
    %102 = vmatprep.subr.mxu0 %v71
    %103 = vmatpush1.msra.mxu0 %v70
    %104 = vmatprep.subr.mxu0 %v73
    %105 = vmatpush1.msra.mxu0 %v72
    %106 = vmatprep.subr.mxu0 %v75
    %107 = vmatpush1.msra.mxu0 %v74
    %108 = vmatprep.subr.mxu0 %v77
    %109 = vmatpush1.msra.mxu0 %v76
    %110 = vmatprep.subr.mxu0 %v79
    %111 = vmatpush1.msra.mxu0 %v78
    %112 = vmatprep.subr.mxu0 %v81
    %113 = vmatpush1.msra.mxu0 %v80
    %114 = vmatprep.subr.mxu0 %v83
    %115 = vmatpush1.msra.mxu0 %v82
    %116 = vmatprep.subr.mxu0 %v85
    %117 = vmatpush1.msra.mxu0 %v84
    %118 = vmatprep.subr.mxu0 %v87
    %119 = vmatpush1.msra.mxu0 %v86
    %120 = vmatprep.subr.mxu0 %v89
    %121 = vmatpush1.msra.mxu0 %v88
    %122 = vmatprep.subr.mxu0 0.0
    %123 = vmatpush1.msra.mxu0 0.0
    %124 = vmatprep.subr.mxu0 0.0
    %125 = vmatpush1.msra.mxu0 0.0
    %126 = vmatprep.subr.mxu0 0.0
    %127 = vmatpush1.msra.mxu0 0.0
    %128 = vmatprep.subr.mxu0 0.0
    %129 = vmatpush1.msra.mxu0 0.0
    %130 = vmatprep.subr.mxu0 0.0
    %131 = vmatpush1.msra.mxu0 0.0
    %132 = vmatprep.subr.mxu0 0.0
    %133 = vmatpush1.msra.mxu0 0.0
    %134 = vmatprep.subr.mxu0 0.0
    %135 = vmatpush1.msra.mxu0 0.0
    %136 = vmatprep.subr.mxu0 0.0
    %137 = vmatpush1.msra.mxu0 0.0
    %138 = vmatprep.subr.mxu0 0.0
    %139 = vmatpush1.msra.mxu0 0.0
    %140 = vmatprep.subr.mxu0 0.0
    %141 = vmatpush1.msra.mxu0 0.0
    %142 = vmatprep.subr.mxu0 0.0
    %143 = vmatpush1.msra.mxu0 0.0
    %144 = vmatprep.subr.mxu0 0.0
    %145 = vmatpush1.msra.mxu0 0.0
    %146 = vmatprep.subr.mxu0 0.0
    %147 = vmatpush1.msra.mxu0 0.0
    %148 = vmatprep.subr.mxu0 0.0
    %149 = vmatpush1.msra.mxu0 0.0
    %150 = vmatprep.subr.mxu0 0.0
    %151 = vmatpush1.msra.mxu0 0.0
    %152 = vmatprep.subr.mxu0 0.0
    %153 = vmatpush1.msra.mxu0 0.0
    %154 = vmatprep.mubr.f32.mxu0 0.0
    %155 = vmatmul.mubr.f32.gmra.mrb[0].mxu0 %v56
    %v156 = vpop.f32.mrb[0].mxu0
    %v157 = vadd.f32 0.0, %v156
    %v158 = vpop.f32.mrb[0].mxu0
    %v159 = vadd.f32 0.0, %v158
    %160 = vmatprep.mubr.f32.mxu0 0.0
    %161 = vmatmul.mubr.f32.gmra.mrb[0].mxu0 %v57
    %v162 = vpop.f32.mrb[0].mxu0
    %v163 = vadd.f32 0.0, %v162
    %v164 = vpop.f32.mrb[0].mxu0
    %v165 = vadd.f32 0.0, %v164
    %166 = vdwg.mxu0
    %v167 = vmax.f32 %v157, 0.0
    %v168 = vmax.f32 %v159, 0.0
    %v169 = vmax.f32 %v163, 0.0
    %v170 = vmax.f32 %v165, 0.0
    %v171 = vld [vmem:[#allocation7] sm:$0xff]
    %v172 = vld [vmem:[#allocation7 + $0x8] sm:$0xff]
    %v173 = vld [vmem:[#allocation7 + $0x10] sm:$0xff]
    %v174 = vld [vmem:[#allocation7 + $0x18] sm:$0xff]
    %v175 = vld [vmem:[#allocation7 + $0x20] sm:$0xff]
    %v176 = vld [vmem:[#allocation7 + $0x28] sm:$0xff]
    %v177 = vld [vmem:[#allocation7 + $0x30] sm:$0xff]
    %v178 = vld [vmem:[#allocation7 + $0x38] sm:$0xff]
    %v179 = vld [vmem:[#allocation7 + $0x40] sm:$0xff]
    %v180 = vld [vmem:[#allocation7 + $0x48] sm:$0xff]
    %v181 = vld [vmem:[#allocation7 + $0x50] sm:$0xff]
    %v182 = vld [vmem:[#allocation7 + $0x58] sm:$0xff]
    %v183 = vld [vmem:[#allocation7 + $0x60] sm:$0xff]
    %v184 = vld [vmem:[#allocation7 + $0x68] sm:$0xff]
    %v185 = vld [vmem:[#allocation7 + $0x70] sm:$0xff]
    %v186 = vld [vmem:[#allocation7 + $0x78] sm:$0xff]
    %v187 = vld [vmem:[#allocation7 + $0x80] sm:$0xff]
    %v188 = vld [vmem:[#allocation7 + $0x88] sm:$0xff]
    %v189 = vld [vmem:[#allocation7 + $0x90] sm:$0xff]
    %v190 = vld [vmem:[#allocation7 + $0x98] sm:$0xff]
    %v191 = vld [vmem:[#allocation7 + $0xa0] sm:$0xff]
    %v192 = vld [vmem:[#allocation7 + $0xa8] sm:$0xff]
    %v193 = vld [vmem:[#allocation7 + $0xb0] sm:$0xff]
    %v194 = vld [vmem:[#allocation7 + $0xb8] sm:$0xff]
    %v195 = vld [vmem:[#allocation7 + $0xc0] sm:$0xff]
    %v196 = vld [vmem:[#allocation7 + $0xc8] sm:$0xff]
    %v197 = vld [vmem:[#allocation7 + $0xd0] sm:$0xff]
    %v198 = vld [vmem:[#allocation7 + $0xd8] sm:$0xff]
    %v199 = vld [vmem:[#allocation7 + $0xe0] sm:$0xff]
    %v200 = vld [vmem:[#allocation7 + $0xe8] sm:$0xff]
    %v201 = vld [vmem:[#allocation7 + $0xf0] sm:$0xff]
    %v202 = vld [vmem:[#allocation7 + $0xf8] sm:$0xff]
    %203 = vmatprep.subr.mxu0 0.0
    %204 = vmatpush1.msra.mxu0 %v171
    %205 = vmatprep.subr.mxu0 0.0
    %206 = vmatpush1.msra.mxu0 %v172
    %207 = vmatprep.subr.mxu0 0.0
    %208 = vmatpush1.msra.mxu0 %v173
    %209 = vmatprep.subr.mxu0 0.0
    %210 = vmatpush1.msra.mxu0 %v174
    %211 = vmatprep.subr.mxu0 0.0
    %212 = vmatpush1.msra.mxu0 %v175
    %213 = vmatprep.subr.mxu0 0.0
    %214 = vmatpush1.msra.mxu0 %v176
    %215 = vmatprep.subr.mxu0 0.0
    %216 = vmatpush1.msra.mxu0 %v177
    %217 = vmatprep.subr.mxu0 0.0
    %218 = vmatpush1.msra.mxu0 %v178
    %219 = vmatprep.subr.mxu0 0.0
    %220 = vmatpush1.msra.mxu0 %v179
    %221 = vmatprep.subr.mxu0 0.0
    %222 = vmatpush1.msra.mxu0 %v180
    %223 = vmatprep.subr.mxu0 0.0
    %224 = vmatpush1.msra.mxu0 %v181
    %225 = vmatprep.subr.mxu0 0.0
    %226 = vmatpush1.msra.mxu0 %v182
    %227 = vmatprep.subr.mxu0 0.0
    %228 = vmatpush1.msra.mxu0 %v183
    %229 = vmatprep.subr.mxu0 0.0
    %230 = vmatpush1.msra.mxu0 %v184
    %231 = vmatprep.subr.mxu0 0.0
    %232 = vmatpush1.msra.mxu0 %v185
    %233 = vmatprep.subr.mxu0 0.0
    %234 = vmatpush1.msra.mxu0 %v186
    %235 = vmatprep.subr.mxu0 0.0
    %236 = vmatpush1.msra.mxu0 %v187
    %237 = vmatprep.subr.mxu0 0.0
    %238 = vmatpush1.msra.mxu0 %v188
    %239 = vmatprep.subr.mxu0 0.0
    %240 = vmatpush1.msra.mxu0 %v189
    %241 = vmatprep.subr.mxu0 0.0
    %242 = vmatpush1.msra.mxu0 %v190
    %243 = vmatprep.subr.mxu0 0.0
    %244 = vmatpush1.msra.mxu0 %v191
    %245 = vmatprep.subr.mxu0 0.0
    %246 = vmatpush1.msra.mxu0 %v192
    %247 = vmatprep.subr.mxu0 0.0
    %248 = vmatpush1.msra.mxu0 %v193
    %249 = vmatprep.subr.mxu0 0.0
    %250 = vmatpush1.msra.mxu0 %v194
    %251 = vmatprep.subr.mxu0 0.0
    %252 = vmatpush1.msra.mxu0 %v195
    %253 = vmatprep.subr.mxu0 0.0
    %254 = vmatpush1.msra.mxu0 %v196
    %255 = vmatprep.subr.mxu0 0.0
    %256 = vmatpush1.msra.mxu0 %v197
    %257 = vmatprep.subr.mxu0 0.0
    %258 = vmatpush1.msra.mxu0 %v198
    %259 = vmatprep.subr.mxu0 0.0
    %260 = vmatpush1.msra.mxu0 %v199
    %261 = vmatprep.subr.mxu0 0.0
    %262 = vmatpush1.msra.mxu0 %v200
    %263 = vmatprep.subr.mxu0 0.0
    %264 = vmatpush1.msra.mxu0 %v201
    %265 = vmatprep.subr.mxu0 0.0
    %266 = vmatpush1.msra.mxu0 %v202
    %267 = vmatprep.mubr.f32.mxu0 %v168
    %268 = vmatmul.mubr.f32.gmra.mrb[0].mxu0 %v167
    %v269 = vpop.f32.mrb[0].mxu0
    %v270 = vadd.f32 %v56, %v269
    %v271 = vpop.f32.mrb[0].mxu0
    %272 = vmatprep.mubr.f32.mxu0 %v170
    %273 = vmatmul.mubr.f32.gmra.mrb[0].mxu0 %v169
    %v274 = vpop.f32.mrb[0].mxu0
    %v275 = vadd.f32 %v57, %v274
    %v276 = vpop.f32.mrb[0].mxu0
    %277 = vdwg.mxu0
    %278 = vadd.xlane.f32.xlu0 %v270
    %v279 = vpop.xlane.xlu0 %278
    %280 = vadd.xlane.f32.xlu0 %v275
    %v281 = vpop.xlane.xlu0 %280
    %v282 = vmul.f32 %v270, %v270
    %v283 = vmul.f32 %v275, %v275
    %284 = vadd.xlane.f32.xlu0 %v282
    %v285 = vpop.xlane.xlu0 %284
    %286 = vadd.xlane.f32.xlu0 %v283
    %v287 = vpop.xlane.xlu0 %286
    %v288 = vmul.f32 %v279, 0.0078125
    %v289 = vmul.f32 %v281, 0.0078125
    %v290 = vmul.f32 %v285, 0.0078125
    %v291 = vmul.f32 %v287, 0.0078125
    %v292 = vmul.f32 %v288, %v288
    %v293 = vmul.f32 %v289, %v289
    %v294 = vsub.f32 %v290, %v292
    %v295 = vsub.f32 %v291, %v293
    %v296 = vmax.f32 %v294, 0.0
    %v297 = vmax.f32 %v295, 0.0
    %v298 = vsub.f32 %v270, %v288
    %v299 = vsub.f32 %v275, %v289
    %v300 = vadd.f32 %v296, 1e-05
    %v301 = vadd.f32 %v297, 1e-05
    %v302 = vrsqrt.pop %v300
    %v303 = vrsqrt.pop %v301
    %v304 = vmul.f32 %v298, %v302
    %v305 = vmul.f32 %v299, %v303
    %306 = vst [vmem:[#allocation8] sm:$0xff] %v304
    %307 = vst [vmem:[#allocation8 + $0x8] sm:$0xff] %v305
    // Predicated region
    $region26: #{tpu_custom_call.1} parent=1 // pred_check
      _
    $region27: #{tpu_custom_call.1} parent=1 // pred_check_branch
      %309 = sbr.rel (0) target = $region29
    $region28: #{tpu_custom_call.1} parent=1 // pred_region
      %s311 = ssub.s32 256, 256
      %312 = vsyncadd [#allocation4], %s311
      %s313 = sshll.u32 [#allocation8], 4
      %s314 = int_to_ptr.vmem [resolvable:$true] %s313
      %319 = dma.vmem_to_hbm [thread:$0]  %s314, 256, %s3, [#allocation4], 128, 128, 8
    $region29: #{tpu_custom_call.1} parent=1 // pred_fallthru
      _
    // Predicated region
    $region30: #{tpu_custom_call.1} parent=1 // pred_check
      _
    $region31: #{tpu_custom_call.1} parent=1 // pred_check_branch
      %321 = sbr.rel (0) target = $region33
    $region32: #{tpu_custom_call.1} parent=1 // pred_region
      %322 = dma.done [#allocation4], 256
    $region33: #{tpu_custom_call.1} parent=1 // pred_fallthru
      _
    %323 = vsyncpa [#allocation3], 1
    %324 = vsyncpa [#allocation6], 1
    %325 = vsyncpa [#allocation4], 1

</llo_original>
